<compile_context>
chip_gen: v5e
topology: v5e:2x2
jax: 0.10.0
libtpu: 0.0.40
codegen_flags: <defaults>
</compile_context>

<pallas_src>
import jax
import jax.numpy as jnp
from jax.experimental import pallas as pl
from jax.experimental.pallas import tpu as pltpu

_LANE = 128


def actor_mlp_kernel(x_ref, w1_ref, b1_ref, w2_ref, b2_ref, w3_ref, b3_ref, o_ref):
    # Layer 1: [TB, S] @ [S, 128] + [1, 128] -> ReLU
    h1 = jnp.dot(x_ref[...], w1_ref[...], preferred_element_type=jnp.float32)
    h1 = jnp.maximum(h1 + b1_ref[...], 0.0)
    # Layer 2: [TB, 128] @ [128, 64] + [1, 64] -> ReLU
    h2 = jnp.dot(h1, w2_ref[...], preferred_element_type=jnp.float32)
    h2 = jnp.maximum(h2 + b2_ref[...], 0.0)
    # Layer 3 (lane-padded): [TB, 64] @ [64, A_pad] + [1, A_pad]
    out = jnp.dot(h2, w3_ref[...], preferred_element_type=jnp.float32) + b3_ref[...]
    o_ref[...] = out.astype(o_ref.dtype)


def actor_forward(state, params, *, tile_b=256):
    """state: [B, state_dim] float32; params: dict of w1,b1,w2,b2,w3,b3."""
    B, S = state.shape
    w1, b1 = params["w1"], params["b1"]
    w2, b2 = params["w2"], params["b2"]
    w3, b3 = params["w3"], params["b3"]
    A = w3.shape[1]

    # --- lane-dense output: pad final layer to a multiple of 128 columns ---
    A_pad = ((A + _LANE - 1) // _LANE) * _LANE
    if A_pad != A:
        w3p = jnp.pad(w3, ((0, 0), (0, A_pad - A)))
        b3p = jnp.pad(b3, ((0, 0), (0, A_pad - A)))
    else:
        w3p, b3p = w3, b3

    # --- batch tiling (pad B up to a multiple of the tile) ---
    tile_b = int(max(8, min(tile_b, ((B + 7) // 8) * 8)))
    B_pad = ((B + tile_b - 1) // tile_b) * tile_b
    x = state if B_pad == B else jnp.pad(state, ((0, B_pad - B), (0, 0)))

    grid = (B_pad // tile_b,)
    resident = lambda shape: pl.BlockSpec(shape, lambda i: (0, 0))

    out = pl.pallas_call(
        actor_mlp_kernel,
        out_shape=jax.ShapeDtypeStruct((B_pad, A_pad), jnp.float32),
        grid=grid,
        in_specs=[
            pl.BlockSpec((tile_b, S), lambda i: (i, 0)),   # state tile (pipelined)
            resident(w1.shape), resident(b1.shape),        # weights stay resident
            resident(w2.shape), resident(b2.shape),
            resident(w3p.shape), resident(b3p.shape),
        ],
        out_specs=pl.BlockSpec((tile_b, A_pad), lambda i: (i, 0)),
        compiler_params=pltpu.CompilerParams(
            dimension_semantics=("parallel",)),            # 2x on v7x, no-op on v5e/v6e
    )(x, w1, b1, w2, b2, w3p, b3p)

    return out[:B, :A]


def init_actor_params(key, state_dim, action_dim):
    """Deterministic synthetic init (PyTorch Linear-style uniform bounds)."""
    ks = jax.random.split(key, 6)

    def lin(kw, kb, fan_in, fan_out):
        bound = 1.0 / jnp.sqrt(float(fan_in))
        w = jax.random.uniform(kw, (fan_in, fan_out), jnp.float32, -bound, bound)
        b = jax.random.uniform(kb, (1, fan_out), jnp.float32, -bound, bound)
        return w, b

    w1, b1 = lin(ks[0], ks[1], state_dim, 128)
    w2, b2 = lin(ks[2], ks[3], 128, 64)
    w3, b3 = lin(ks[4], ks[5], 64, action_dim)
    return {"w1": w1, "b1": b1, "w2": w2, "b2": b2, "w3": w3, "b3": b3}


def actor_forward_ref(state, p):
    h1 = jnp.maximum(state @ p["w1"] + p["b1"], 0.0)
    h2 = jnp.maximum(h1 @ p["w2"] + p["b2"], 0.0)
    return h2 @ p["w3"] + p["b3"]


# TODO(synk): optimizer (Adam), MSELoss and save/load are training/IO-side and
# have no Pallas forward-pass equivalent; only `forward` is implemented here.

if __name__ == "__main__":
    key = jax.random.PRNGKey(0)
    k_params, k_state = jax.random.split(key)

    # Small demo shapes; tile_b=32 exercises the batch grid + row padding
    # (B=50 -> padded to 64 -> grid of 2 tiles).  Real callers should feed
    # thousands of states per call with the default tile_b=256.
    batch, state_dim, action_dim = 50, 32, 4
    params = init_actor_params(k_params, state_dim, action_dim)
    state = jax.random.normal(k_state, (batch, state_dim), jnp.float32)

    out = actor_forward(state, params, tile_b=32)
    out = jax.block_until_ready(out)

    ref = actor_forward_ref(state, params)
    assert out.shape == (batch, action_dim)
    assert jnp.allclose(out, ref, atol=1e-5, rtol=1e-5), "mismatch vs reference"

    print("KERNEL_OK")
</pallas_src>

<mosaic_0001>
module attributes {stable_mosaic.version = 11 : i64} {
  func.func @actor_mlp_kernel(%arg0: i32, %arg1: memref<32x32xf32, #tpu.memory_space<vmem>>, %arg2: memref<32x128xf32, #tpu.memory_space<vmem>>, %arg3: memref<1x128xf32, #tpu.memory_space<vmem>>, %arg4: memref<128x64xf32, #tpu.memory_space<vmem>>, %arg5: memref<1x64xf32, #tpu.memory_space<vmem>>, %arg6: memref<64x128xf32, #tpu.memory_space<vmem>>, %arg7: memref<1x128xf32, #tpu.memory_space<vmem>>, %arg8: memref<32x128xf32, #tpu.memory_space<vmem>>) attributes {dimension_semantics = [#tpu.dimension_semantics<parallel>], iteration_bounds = array<i64: 2>, scalar_prefetch = 0 : i64, scratch_operands = 0 : i64, tpu.core_type = #tpu.core_type<tc>, window_params = [{transform_indices = @transform_0, window_bounds = array<i64: 32, 32>}, {pipeline_mode = #tpu.pipeline_mode<synchronous>, transform_indices = @transform_1, window_bounds = array<i64: 32, 128>}, {pipeline_mode = #tpu.pipeline_mode<synchronous>, transform_indices = @transform_2, window_bounds = array<i64: 1, 128>}, {pipeline_mode = #tpu.pipeline_mode<synchronous>, transform_indices = @transform_3, window_bounds = array<i64: 128, 64>}, {pipeline_mode = #tpu.pipeline_mode<synchronous>, transform_indices = @transform_4, window_bounds = array<i64: 1, 64>}, {pipeline_mode = #tpu.pipeline_mode<synchronous>, transform_indices = @transform_5, window_bounds = array<i64: 64, 128>}, {pipeline_mode = #tpu.pipeline_mode<synchronous>, transform_indices = @transform_6, window_bounds = array<i64: 1, 128>}, {transform_indices = @transform_7, window_bounds = array<i64: 32, 128>}]} {
    %c0 = arith.constant 0 : index
    %c0_0 = arith.constant 0 : index
    %0 = vector.load %arg1[%c0, %c0_0] : memref<32x32xf32, #tpu.memory_space<vmem>>, vector<32x32xf32>
    %c0_1 = arith.constant 0 : index
    %c0_2 = arith.constant 0 : index
    %1 = vector.load %arg2[%c0_1, %c0_2] : memref<32x128xf32, #tpu.memory_space<vmem>>, vector<32x128xf32>
    %cst = arith.constant dense<0.000000e+00> : vector<32x128xf32>
    %2 = tpu.matmul %0, %1, %cst {dimension_numbers = #tpu.dot_dimension_numbers<[1], [0], [0], [1], [0, 0, 1, 1], [], []>} : vector<32x32xf32>, vector<32x128xf32>, vector<32x128xf32> -> vector<32x128xf32>
    %c0_3 = arith.constant 0 : index
    %c0_4 = arith.constant 0 : index
    %3 = vector.load %arg3[%c0_3, %c0_4] : memref<1x128xf32, #tpu.memory_space<vmem>>, vector<1x128xf32>
    %4 = vector.broadcast %3 : vector<1x128xf32> to vector<32x128xf32>
    %5 = arith.addf %2, %4 : vector<32x128xf32>
    %cst_5 = arith.constant 0.000000e+00 : f32
    %6 = vector.broadcast %cst_5 : f32 to vector<32x128xf32>
    %7 = arith.maximumf %5, %6 : vector<32x128xf32>
    %c0_6 = arith.constant 0 : index
    %c0_7 = arith.constant 0 : index
    %8 = vector.load %arg4[%c0_6, %c0_7] : memref<128x64xf32, #tpu.memory_space<vmem>>, vector<128x64xf32>
    %cst_8 = arith.constant dense<0.000000e+00> : vector<32x64xf32>
    %9 = tpu.matmul %7, %8, %cst_8 {dimension_numbers = #tpu.dot_dimension_numbers<[1], [0], [0], [1], [0, 0, 1, 1], [], []>} : vector<32x128xf32>, vector<128x64xf32>, vector<32x64xf32> -> vector<32x64xf32>
    %c0_9 = arith.constant 0 : index
    %c0_10 = arith.constant 0 : index
    %10 = vector.load %arg5[%c0_9, %c0_10] : memref<1x64xf32, #tpu.memory_space<vmem>>, vector<1x64xf32>
    %11 = vector.broadcast %10 : vector<1x64xf32> to vector<32x64xf32>
    %12 = arith.addf %9, %11 : vector<32x64xf32>
    %cst_11 = arith.constant 0.000000e+00 : f32
    %13 = vector.broadcast %cst_11 : f32 to vector<32x64xf32>
    %14 = arith.maximumf %12, %13 : vector<32x64xf32>
    %c0_12 = arith.constant 0 : index
    %c0_13 = arith.constant 0 : index
    %15 = vector.load %arg6[%c0_12, %c0_13] : memref<64x128xf32, #tpu.memory_space<vmem>>, vector<64x128xf32>
    %cst_14 = arith.constant dense<0.000000e+00> : vector<32x128xf32>
    %16 = tpu.matmul %14, %15, %cst_14 {dimension_numbers = #tpu.dot_dimension_numbers<[1], [0], [0], [1], [0, 0, 1, 1], [], []>} : vector<32x64xf32>, vector<64x128xf32>, vector<32x128xf32> -> vector<32x128xf32>
    %c0_15 = arith.constant 0 : index
    %c0_16 = arith.constant 0 : index
    %17 = vector.load %arg7[%c0_15, %c0_16] : memref<1x128xf32, #tpu.memory_space<vmem>>, vector<1x128xf32>
    %18 = vector.broadcast %17 : vector<1x128xf32> to vector<32x128xf32>
    %19 = arith.addf %16, %18 : vector<32x128xf32>
    %c0_17 = arith.constant 0 : index
    %c0_18 = arith.constant 0 : index
    %20 = vector.load %arg8[%c0_17, %c0_18] : memref<32x128xf32, #tpu.memory_space<vmem>>, vector<32x128xf32>
    tpu.vector_store %arg8[%c0_17, %c0_18], %19 {strides = array<i32>} : memref<32x128xf32, #tpu.memory_space<vmem>>, vector<32x128xf32>,
    return
  }
  func.func @transform_0(%arg0: i32) -> (i32, i32) {
    %c0_i32 = arith.constant 0 : i32
    %c0_i32_0 = arith.constant 0 : i32
    return %arg0, %c0_i32 : i32, i32
  }
  func.func @transform_1(%arg0: i32) -> (i32, i32) {
    %c0_i32 = arith.constant 0 : i32
    %c0_i32_0 = arith.constant 0 : i32
    %c0_i32_1 = arith.constant 0 : i32
    return %c0_i32, %c0_i32_0 : i32, i32
  }
  func.func @transform_2(%arg0: i32) -> (i32, i32) {
    %c0_i32 = arith.constant 0 : i32
    %c0_i32_0 = arith.constant 0 : i32
    %c0_i32_1 = arith.constant 0 : i32
    return %c0_i32, %c0_i32_0 : i32, i32
  }
  func.func @transform_3(%arg0: i32) -> (i32, i32) {
    %c0_i32 = arith.constant 0 : i32
    %c0_i32_0 = arith.constant 0 : i32
    %c0_i32_1 = arith.constant 0 : i32
    return %c0_i32, %c0_i32_0 : i32, i32
  }
  func.func @transform_4(%arg0: i32) -> (i32, i32) {
    %c0_i32 = arith.constant 0 : i32
    %c0_i32_0 = arith.constant 0 : i32
    %c0_i32_1 = arith.constant 0 : i32
    return %c0_i32, %c0_i32_0 : i32, i32
  }
  func.func @transform_5(%arg0: i32) -> (i32, i32) {
    %c0_i32 = arith.constant 0 : i32
    %c0_i32_0 = arith.constant 0 : i32
    %c0_i32_1 = arith.constant 0 : i32
    return %c0_i32, %c0_i32_0 : i32, i32
  }
  func.func @transform_6(%arg0: i32) -> (i32, i32) {
    %c0_i32 = arith.constant 0 : i32
    %c0_i32_0 = arith.constant 0 : i32
    %c0_i32_1 = arith.constant 0 : i32
    return %c0_i32, %c0_i32_0 : i32, i32
  }
  func.func @transform_7(%arg0: i32) -> (i32, i32) {
    %c0_i32 = arith.constant 0 : i32
    %c0_i32_0 = arith.constant 0 : i32
    return %arg0, %c0_i32 : i32, i32
  }
}

</mosaic_0001>

<llo_original>
// kernel: tpu_custom_call.1
$region0: #{tpu_custom_call.1}
  #allocation0 [shape = 'u32[]', space=smem, size = 0x4, offset = 0x4, fixed_abs, tag = 'smem constant byte address 0x4 - core index']
  #allocation1 [shape = 'u32[72,128]{1,0:T(1,128)}', space=vmem, size = 0x9000, scoped, tag = 'internal scratch']
  %s0 = inlined_call_operand.vmem [shape: f32[64,32], index: 0, kind: input, shape index: {}]
  %s1 = inlined_call_operand.vmem [shape: f32[32,128], index: 1, kind: input, shape index: {}]
  %s2 = inlined_call_operand.vmem [shape: f32[1,128], index: 2, kind: input, shape index: {}]
  %s3 = inlined_call_operand.vmem [shape: f32[128,64], index: 3, kind: input, shape index: {}]
  %s4 = inlined_call_operand.vmem [shape: f32[1,64], index: 4, kind: input, shape index: {}]
  %s5 = inlined_call_operand.vmem [shape: f32[64,128], index: 5, kind: input, shape index: {}]
  %s6 = inlined_call_operand.vmem [shape: f32[1,128], index: 6, kind: input, shape index: {}]
  %s7 = inlined_call_operand.hbm [shape: f32[64,128], index: 7, kind: output, shape index: {}]
  %s8 = sld [smem:[#allocation0]]
  $region61: #{tpu_custom_call.1} parent=0
    _
  %s10 = ssub.s32 1, %s8
  %s11 = scalar_select 0, %s10, %s8
  $region1: #{tpu_custom_call.1} parent=0
    #allocation2 [shape = 'u8[32768]{0}', space=vmem, size = 0x8000, scoped, tag = 'output window, operand 0']
    #allocation3 [shape = 's32[2]{0}', space=sflag, size = 0x8, scoped, tag = 'scoped memory for tpu_custom_call.1']
    %12 = vsyncpa [#allocation3], 0
    %s13 = scalar_lea.sflag [#allocation3], 1
    %14 = vsyncpa %s13, 0
    loop: start=0, step=1, limit=4
    $region2: #{tpu_custom_call.1} parent=1 // loop_pre_header
      _
    $region3: #{tpu_custom_call.1} parent=1 // loop_header
      %s16 = sphi 0, %s20
      %p17 = scmp.ge.s32.totalorder %s16, 4
      %s26 = sphi 0, %s28
      %s29 = sphi 0, %s26
      %s30 = sphi 0, %s29
      %s46 = sphi 0, %s30
      %s50 = sphi 0, %s50
      %s52 = sphi 0, %s50
      %s53 = sphi 0, %s52
      %s67 = sphi 0, %s53
      %s71 = sphi 0, %s71
      %s73 = sphi 0, %s71
      %s74 = sphi 0, %s73
      %s88 = sphi 0, %s74
      %s92 = sphi 0, %s92
      %s94 = sphi 0, %s92
      %s95 = sphi 0, %s94
      %s109 = sphi 0, %s95
      %s113 = sphi 0, %s113
      %s115 = sphi 0, %s113
      %s116 = sphi 0, %s115
      %s130 = sphi 0, %s116
      %s134 = sphi 0, %s134
      %s136 = sphi 0, %s134
      %s137 = sphi 0, %s136
      %s151 = sphi 0, %s137
      %s155 = sphi 0, %s155
      %s157 = sphi 0, %s155
      %s158 = sphi 0, %s157
      %s172 = sphi 0, %s158
      %s178 = sphi 0, %s180
      %s181 = sphi 0, %s178
      %s182 = sphi 0, %s181
      %s198 = sphi 0, %s182
    $region4: #{tpu_custom_call.1} parent=1 // loop_header_branch
      %19 = sbr.rel (%p17) target = $region8
    $region5: #{tpu_custom_call.1} parent=1 // loop_body
      %s21 = ssub.s32 %s16, 1
      %s22 = ssub.s32 %s16, 2
      %s23 = sadd.s32 %s16, 1
      %s24 = ssub.s32 %s16, %s23
      %p25 = scmp.eq.s32.totalorder %s24, 0
      %s27 = sadd.s32 %s26, 1
      %s28 = scalar_select %p25, %s26, %s27
      %p31 = pneg %p25
      %p32 = scmp.eq.s32.totalorder %s16, 1
      %p33 = por %p31, %p32
      %p34 = scmp.ne.s32.totalorder %s26, %s29
      %p35 = scmp.eq.s32.totalorder %s16, 0
      %p36 = por %p34, %p35
      %p37 = scmp.ne.s32.totalorder %s26, %s29
      %p38 = scmp.eq.s32.totalorder %s21, 1
      %p39 = por %p37, %p38
      %p40 = scmp.ne.s32.totalorder %s29, %s30
      %p41 = scmp.eq.s32.totalorder %s21, 0
      %p42 = por %p40, %p41
      %p43 = scmp.ne.s32.totalorder %s29, %s30
      %p44 = scmp.eq.s32.totalorder %s22, 1
      %p45 = por %p43, %p44
      %p47 = scmp.ne.s32.totalorder %s30, %s46
      %p48 = scmp.eq.s32.totalorder %s22, 0
      %p49 = por %p47, %p48
      %s51 = sadd.s32 %s50, 1
      %p54 = scmp.eq.s32.totalorder %s16, 1
      %p55 = scmp.ne.s32.totalorder %s50, %s52
      %p56 = scmp.eq.s32.totalorder %s16, 0
      %p57 = por %p55, %p56
      %p58 = scmp.ne.s32.totalorder %s50, %s52
      %p59 = scmp.eq.s32.totalorder %s21, 1
      %p60 = por %p58, %p59
      %p61 = scmp.ne.s32.totalorder %s52, %s53
      %p62 = scmp.eq.s32.totalorder %s21, 0
      %p63 = por %p61, %p62
      %p64 = scmp.ne.s32.totalorder %s52, %s53
      %p65 = scmp.eq.s32.totalorder %s22, 1
      %p66 = por %p64, %p65
      %p68 = scmp.ne.s32.totalorder %s53, %s67
      %p69 = scmp.eq.s32.totalorder %s22, 0
      %p70 = por %p68, %p69
      %s72 = sadd.s32 %s71, 1
      %p75 = scmp.eq.s32.totalorder %s16, 1
      %p76 = scmp.ne.s32.totalorder %s71, %s73
      %p77 = scmp.eq.s32.totalorder %s16, 0
      %p78 = por %p76, %p77
      %p79 = scmp.ne.s32.totalorder %s71, %s73
      %p80 = scmp.eq.s32.totalorder %s21, 1
      %p81 = por %p79, %p80
      %p82 = scmp.ne.s32.totalorder %s73, %s74
      %p83 = scmp.eq.s32.totalorder %s21, 0
      %p84 = por %p82, %p83
      %p85 = scmp.ne.s32.totalorder %s73, %s74
      %p86 = scmp.eq.s32.totalorder %s22, 1
      %p87 = por %p85, %p86
      %p89 = scmp.ne.s32.totalorder %s74, %s88
      %p90 = scmp.eq.s32.totalorder %s22, 0
      %p91 = por %p89, %p90
      %s93 = sadd.s32 %s92, 1
      %p96 = scmp.eq.s32.totalorder %s16, 1
      %p97 = scmp.ne.s32.totalorder %s92, %s94
      %p98 = scmp.eq.s32.totalorder %s16, 0
      %p99 = por %p97, %p98
      %p100 = scmp.ne.s32.totalorder %s92, %s94
      %p101 = scmp.eq.s32.totalorder %s21, 1
      %p102 = por %p100, %p101
      %p103 = scmp.ne.s32.totalorder %s94, %s95
      %p104 = scmp.eq.s32.totalorder %s21, 0
      %p105 = por %p103, %p104
      %p106 = scmp.ne.s32.totalorder %s94, %s95
      %p107 = scmp.eq.s32.totalorder %s22, 1
      %p108 = por %p106, %p107
      %p110 = scmp.ne.s32.totalorder %s95, %s109
      %p111 = scmp.eq.s32.totalorder %s22, 0
      %p112 = por %p110, %p111
      %s114 = sadd.s32 %s113, 1
      %p117 = scmp.eq.s32.totalorder %s16, 1
      %p118 = scmp.ne.s32.totalorder %s113, %s115
      %p119 = scmp.eq.s32.totalorder %s16, 0
      %p120 = por %p118, %p119
      %p121 = scmp.ne.s32.totalorder %s113, %s115
      %p122 = scmp.eq.s32.totalorder %s21, 1
      %p123 = por %p121, %p122
      %p124 = scmp.ne.s32.totalorder %s115, %s116
      %p125 = scmp.eq.s32.totalorder %s21, 0
      %p126 = por %p124, %p125
      %p127 = scmp.ne.s32.totalorder %s115, %s116
      %p128 = scmp.eq.s32.totalorder %s22, 1
      %p129 = por %p127, %p128
      %p131 = scmp.ne.s32.totalorder %s116, %s130
      %p132 = scmp.eq.s32.totalorder %s22, 0
      %p133 = por %p131, %p132
      %s135 = sadd.s32 %s134, 1
      %p138 = scmp.eq.s32.totalorder %s16, 1
      %p139 = scmp.ne.s32.totalorder %s134, %s136
      %p140 = scmp.eq.s32.totalorder %s16, 0
      %p141 = por %p139, %p140
      %p142 = scmp.ne.s32.totalorder %s134, %s136
      %p143 = scmp.eq.s32.totalorder %s21, 1
      %p144 = por %p142, %p143
      %p145 = scmp.ne.s32.totalorder %s136, %s137
      %p146 = scmp.eq.s32.totalorder %s21, 0
      %p147 = por %p145, %p146
      %p148 = scmp.ne.s32.totalorder %s136, %s137
      %p149 = scmp.eq.s32.totalorder %s22, 1
      %p150 = por %p148, %p149
      %p152 = scmp.ne.s32.totalorder %s137, %s151
      %p153 = scmp.eq.s32.totalorder %s22, 0
      %p154 = por %p152, %p153
      %s156 = sadd.s32 %s155, 1
      %p159 = scmp.eq.s32.totalorder %s16, 1
      %p160 = scmp.ne.s32.totalorder %s155, %s157
      %p161 = scmp.eq.s32.totalorder %s16, 0
      %p162 = por %p160, %p161
      %p163 = scmp.ne.s32.totalorder %s155, %s157
      %p164 = scmp.eq.s32.totalorder %s21, 1
      %p165 = por %p163, %p164
      %p166 = scmp.ne.s32.totalorder %s157, %s158
      %p167 = scmp.eq.s32.totalorder %s21, 0
      %p168 = por %p166, %p167
      %p169 = scmp.ne.s32.totalorder %s157, %s158
      %p170 = scmp.eq.s32.totalorder %s22, 1
      %p171 = por %p169, %p170
      %p173 = scmp.ne.s32.totalorder %s158, %s172
      %p174 = scmp.eq.s32.totalorder %s22, 0
      %p175 = por %p173, %p174
      %s176 = ssub.s32 %s16, %s23
      %p177 = scmp.eq.s32.totalorder %s176, 0
      %s179 = sadd.s32 %s178, 1
      %s180 = scalar_select %p177, %s178, %s179
      %p183 = pneg %p177
      %p184 = scmp.eq.s32.totalorder %s16, 1
      %p185 = por %p183, %p184
      %p186 = scmp.ne.s32.totalorder %s178, %s181
      %p187 = scmp.eq.s32.totalorder %s16, 0
      %p188 = por %p186, %p187
      %p189 = scmp.ne.s32.totalorder %s178, %s181
      %p190 = scmp.eq.s32.totalorder %s21, 1
      %p191 = por %p189, %p190
      %p192 = scmp.ne.s32.totalorder %s181, %s182
      %p193 = scmp.eq.s32.totalorder %s21, 0
      %p194 = por %p192, %p193
      %p195 = scmp.ne.s32.totalorder %s181, %s182
      %p196 = scmp.eq.s32.totalorder %s22, 1
      %p197 = por %p195, %p196
      %p199 = scmp.ne.s32.totalorder %s182, %s198
      %p200 = scmp.eq.s32.totalorder %s22, 0
      %p201 = por %p199, %p200
      %p202 = scmp.le.s32.totalorder 1, %s16
      %p203 = scmp.lt.s32.totalorder %s16, 3
      %p204 = pnand %p202, %p203
      %p205 = pneg %p204
      // Predicated region
      $region9: #{tpu_custom_call.1} parent=5 // pred_check
        _
      $region10: #{tpu_custom_call.1} parent=5 // pred_check_branch
        %207 = sbr.rel (%p204) target = $region12
      $region11: #{tpu_custom_call.1} parent=5 // pred_region
        %s208 = ssub.s32 %s16, 1
        // Predicated region
        $region13: #{tpu_custom_call.1} parent=11 // pred_check
          %p209 = pneg %p63
        $region14: #{tpu_custom_call.1} parent=11 // pred_check_branch
          %211 = sbr.rel (%p209) target = $region16
        $region15: #{tpu_custom_call.1} parent=11 // pred_region
          _
        $region16: #{tpu_custom_call.1} parent=11 // pred_fallthru
          _
        // Predicated region
        $region17: #{tpu_custom_call.1} parent=11 // pred_check
          %p212 = pneg %p84
        $region18: #{tpu_custom_call.1} parent=11 // pred_check_branch
          %214 = sbr.rel (%p212) target = $region20
        $region19: #{tpu_custom_call.1} parent=11 // pred_region
          _
        $region20: #{tpu_custom_call.1} parent=11 // pred_fallthru
          _
        // Predicated region
        $region21: #{tpu_custom_call.1} parent=11 // pred_check
          %p215 = pneg %p105
        $region22: #{tpu_custom_call.1} parent=11 // pred_check_branch
          %217 = sbr.rel (%p215) target = $region24
        $region23: #{tpu_custom_call.1} parent=11 // pred_region
          _
        $region24: #{tpu_custom_call.1} parent=11 // pred_fallthru
          _
        // Predicated region
        $region25: #{tpu_custom_call.1} parent=11 // pred_check
          %p218 = pneg %p126
        $region26: #{tpu_custom_call.1} parent=11 // pred_check_branch
          %220 = sbr.rel (%p218) target = $region28
        $region27: #{tpu_custom_call.1} parent=11 // pred_region
          _
        $region28: #{tpu_custom_call.1} parent=11 // pred_fallthru
          _
        // Predicated region
        $region29: #{tpu_custom_call.1} parent=11 // pred_check
          %p221 = pneg %p147
        $region30: #{tpu_custom_call.1} parent=11 // pred_check_branch
          %223 = sbr.rel (%p221) target = $region32
        $region31: #{tpu_custom_call.1} parent=11 // pred_region
          _
        $region32: #{tpu_custom_call.1} parent=11 // pred_fallthru
          _
        // Predicated region
        $region33: #{tpu_custom_call.1} parent=11 // pred_check
          %p224 = pneg %p168
        $region34: #{tpu_custom_call.1} parent=11 // pred_check_branch
          %226 = sbr.rel (%p224) target = $region36
        $region35: #{tpu_custom_call.1} parent=11 // pred_region
          _
        $region36: #{tpu_custom_call.1} parent=11 // pred_fallthru
          _
      $region12: #{tpu_custom_call.1} parent=5 // pred_fallthru
        _
      %p227 = scmp.lt.s32.totalorder %s16, 2
      // Predicated region
      $region37: #{tpu_custom_call.1} parent=5 // pred_check
        %p228 = pneg %p227
      $region38: #{tpu_custom_call.1} parent=5 // pred_check_branch
        %230 = sbr.rel (%p228) target = $region40
      $region39: #{tpu_custom_call.1} parent=5 // pred_region
        // Predicated region
        $region41: #{tpu_custom_call.1} parent=39 // pred_check
          %p231 = pneg %p36
        $region42: #{tpu_custom_call.1} parent=39 // pred_check_branch
          %233 = sbr.rel (%p231) target = $region44
        $region43: #{tpu_custom_call.1} parent=39 // pred_region
          %s234 = smul.u32 4, %s16
          %p235 = scmp.lt.s32.totalorder %s234, 7
          %s236 = scalar_select %p235, %s234, 7
          %s237 = smul.addr %s236, 8
          %s238 = scalar_lea.vmem %s0, %s237
          %s239 = smul.u32 4, %s16
        $region44: #{tpu_custom_call.1} parent=39 // pred_fallthru
          _
      $region40: #{tpu_custom_call.1} parent=5 // pred_fallthru
        _
      %p240 = scmp.le.s32.totalorder 1, %s16
      %p241 = scmp.lt.s32.totalorder %s16, 3
      %p242 = pnand %p240, %p241
      %p243 = pneg %p242
      // Predicated region
      $region45: #{tpu_custom_call.1} parent=5 // pred_check
        _
      $region46: #{tpu_custom_call.1} parent=5 // pred_check_branch
        %245 = sbr.rel (%p242) target = $region48
      $region47: #{tpu_custom_call.1} parent=5 // pred_region
        %s246 = ssub.s32 %s16, 1
        %s247 = smul.u32 4, %s21
        %p248 = scmp.lt.s32.totalorder %s247, 7
        %s249 = scalar_select %p248, %s247, 7
        %s250 = smul.addr %s249, 8
        %s251 = scalar_lea.vmem %s0, %s250
        %p252 = pneg %p42
        %p253 = pneg %p39
        %p254 = pneg %p63
        %p255 = pneg %p60
        %p256 = pneg %p84
        %p257 = pneg %p81
        %p258 = pneg %p105
        %p259 = pneg %p102
        %p260 = pneg %p126
        %p261 = pneg %p123
        %p262 = pneg %p147
        %p263 = pneg %p144
        %p264 = pneg %p168
        %p265 = pneg %p165
        %p266 = pneg %p194
        %p267 = pneg %p191
        %s268 = sand.u32 %s181, 1
        %s269 = scalar_lea.sflag [#allocation3], %s268
        %s270 = sand.u32 %s181, 1
        %s271 = smul.addr %s270, 32
        %s272 = scalar_lea.vmem [#allocation2], %s271
        %s273 = smul.u32 4, %s21
        %p274 = scmp.lt.s32.totalorder %s273, 7
        %s275 = scalar_select %p274, %s273, 7
        %s276 = smul.addr %s275, 8
        %s277 = scalar_lea.vmem %s0, %s276
        %s278 = smul.u32 4, %s21
        %s279 = smul.u32 4, %s21
        %v280 = vld [vmem:[%s277] sm:$0xff]
        %v281 = vld [vmem:[%s277 + $0x8] sm:$0xff]
        %v282 = vld [vmem:[%s277 + $0x10] sm:$0xff]
        %v283 = vld [vmem:[%s277 + $0x18] sm:$0xff]
        %v284 = vld [vmem:[%s1] sm:$0xff]
        %v285 = vld [vmem:[%s1 + $0x8] sm:$0xff]
        %v286 = vld [vmem:[%s1 + $0x10] sm:$0xff]
        %v287 = vld [vmem:[%s1 + $0x18] sm:$0xff]
        %v288 = vld [vmem:[%s2] sm:$0x1]
        %v290 = vperm.slane %v288, 0
        %vm292 = vcmask 261120
        %v294 = vsel %vm292, %v280, 0
        %v297 = vsel %vm292, %v281, 0
        %v300 = vsel %vm292, %v282, 0
        %v303 = vsel %vm292, %v283, 0
        %305 = vmatpush.msra.mxu0 0.0
        %306 = vmatpush.msra.mxu0 0.0
        %307 = vmatpush.msra.mxu0 0.0
        %308 = vmatpush.msra.mxu0 0.0
        %309 = vmatpush.msra.mxu0 0.0
        %310 = vmatpush.msra.mxu0 0.0
        %311 = vmatpush.msra.mxu0 0.0
        %312 = vmatpush.msra.mxu0 0.0
        %313 = vmatpush.msra.mxu0 0.0
        %314 = vmatpush.msra.mxu0 0.0
        %315 = vmatpush.msra.mxu0 0.0
        %316 = vmatpush.msra.mxu0 0.0
        %317 = vmatpush.msra.mxu0 %v287
        %318 = vmatpush.msra.mxu0 %v286
        %319 = vmatpush.msra.mxu0 %v285
        %320 = vmatpush.msra.mxu0 %v284
        %321 = vmatmul.f32.gmra.mxu0 %v294
        %v322 = vpop.f32.mrf.mxu0
        %v323 = vadd.f32 %v290, %v322
        %324 = vmatmul.f32.gmra.mxu0 %v297
        %v325 = vpop.f32.mrf.mxu0
        %v326 = vadd.f32 %v290, %v325
        %327 = vmatmul.f32.gmra.mxu0 %v300
        %v328 = vpop.f32.mrf.mxu0
        %v329 = vadd.f32 %v290, %v328
        %330 = vmatmul.f32.gmra.mxu0 %v303
        %v331 = vpop.f32.mrf.mxu0
        %v332 = vadd.f32 %v290, %v331
        %333 = vdwg.mxu0
        %v334 = vmax.f32 %v323, 0.0
        %v335 = vmax.f32 %v326, 0.0
        %v336 = vmax.f32 %v329, 0.0
        %v337 = vmax.f32 %v332, 0.0
        %v338 = vld [vmem:[%s3] sm:$0xff]
        %v339 = vld [vmem:[%s3 + $0x8] sm:$0xff]
        %v340 = vld [vmem:[%s3 + $0x10] sm:$0xff]
        %v341 = vld [vmem:[%s3 + $0x18] sm:$0xff]
        %v342 = vld [vmem:[%s3 + $0x20] sm:$0xff]
        %v343 = vld [vmem:[%s3 + $0x28] sm:$0xff]
        %v344 = vld [vmem:[%s3 + $0x30] sm:$0xff]
        %v345 = vld [vmem:[%s3 + $0x38] sm:$0xff]
        %v346 = vld [vmem:[%s3 + $0x40] sm:$0xff]
        %v347 = vld [vmem:[%s3 + $0x48] sm:$0xff]
        %v348 = vld [vmem:[%s3 + $0x50] sm:$0xff]
        %v349 = vld [vmem:[%s3 + $0x58] sm:$0xff]
        %v350 = vld [vmem:[%s3 + $0x60] sm:$0xff]
        %v351 = vld [vmem:[%s3 + $0x68] sm:$0xff]
        %v352 = vld [vmem:[%s3 + $0x70] sm:$0xff]
        %v353 = vld [vmem:[%s3 + $0x78] sm:$0xff]
        %v354 = vld [vmem:[%s4] sm:$0x1]
        %v356 = vperm.slane %v354, 0
        %358 = vmatpush.msra.mxu0 %v353
        %359 = vmatpush.msra.mxu0 %v352
        %360 = vmatpush.msra.mxu0 %v351
        %361 = vmatpush.msra.mxu0 %v350
        %362 = vmatpush.msra.mxu0 %v349
        %363 = vmatpush.msra.mxu0 %v348
        %364 = vmatpush.msra.mxu0 %v347
        %365 = vmatpush.msra.mxu0 %v346
        %366 = vmatpush.msra.mxu0 %v345
        %367 = vmatpush.msra.mxu0 %v344
        %368 = vmatpush.msra.mxu0 %v343
        %369 = vmatpush.msra.mxu0 %v342
        %370 = vmatpush.msra.mxu0 %v341
        %371 = vmatpush.msra.mxu0 %v340
        %372 = vmatpush.msra.mxu0 %v339
        %373 = vmatpush.msra.mxu0 %v338
        %374 = vmatmul.f32.gmra.mxu0 %v334
        %v375 = vpop.f32.mrf.mxu0
        %v376 = vadd.f32 %v356, %v375
        %377 = vmatmul.f32.gmra.mxu0 %v335
        %v378 = vpop.f32.mrf.mxu0
        %v379 = vadd.f32 %v356, %v378
        %380 = vmatmul.f32.gmra.mxu0 %v336
        %v381 = vpop.f32.mrf.mxu0
        %v382 = vadd.f32 %v356, %v381
        %383 = vmatmul.f32.gmra.mxu0 %v337
        %v384 = vpop.f32.mrf.mxu0
        %v385 = vadd.f32 %v356, %v384
        %386 = vdwg.mxu0
        %v387 = vmax.f32 %v376, 0.0
        %v388 = vmax.f32 %v379, 0.0
        %v389 = vmax.f32 %v382, 0.0
        %v390 = vmax.f32 %v385, 0.0
        %v391 = vld [vmem:[%s5] sm:$0xff]
        %v392 = vld [vmem:[%s5 + $0x8] sm:$0xff]
        %v393 = vld [vmem:[%s5 + $0x10] sm:$0xff]
        %v394 = vld [vmem:[%s5 + $0x18] sm:$0xff]
        %v395 = vld [vmem:[%s5 + $0x20] sm:$0xff]
        %v396 = vld [vmem:[%s5 + $0x28] sm:$0xff]
        %v397 = vld [vmem:[%s5 + $0x30] sm:$0xff]
        %v398 = vld [vmem:[%s5 + $0x38] sm:$0xff]
        %v399 = vld [vmem:[%s6] sm:$0x1]
        %v401 = vperm.slane %v399, 0
        %vm403 = vcmask 523264
        %v405 = vsel %vm403, %v387, 0
        %v408 = vsel %vm403, %v388, 0
        %v411 = vsel %vm403, %v389, 0
        %v414 = vsel %vm403, %v390, 0
        %416 = vmatpush.msra.mxu0 0.0
        %417 = vmatpush.msra.mxu0 0.0
        %418 = vmatpush.msra.mxu0 0.0
        %419 = vmatpush.msra.mxu0 0.0
        %420 = vmatpush.msra.mxu0 0.0
        %421 = vmatpush.msra.mxu0 0.0
        %422 = vmatpush.msra.mxu0 0.0
        %423 = vmatpush.msra.mxu0 0.0
        %424 = vmatpush.msra.mxu0 %v398
        %425 = vmatpush.msra.mxu0 %v397
        %426 = vmatpush.msra.mxu0 %v396
        %427 = vmatpush.msra.mxu0 %v395
        %428 = vmatpush.msra.mxu0 %v394
        %429 = vmatpush.msra.mxu0 %v393
        %430 = vmatpush.msra.mxu0 %v392
        %431 = vmatpush.msra.mxu0 %v391
        %432 = vmatmul.f32.gmra.mxu0 %v405
        %v433 = vpop.f32.mrf.mxu0
        %v434 = vadd.f32 %v401, %v433
        %435 = vmatmul.f32.gmra.mxu0 %v408
        %v436 = vpop.f32.mrf.mxu0
        %v437 = vadd.f32 %v401, %v436
        %438 = vmatmul.f32.gmra.mxu0 %v411
        %v439 = vpop.f32.mrf.mxu0
        %v440 = vadd.f32 %v401, %v439
        %441 = vmatmul.f32.gmra.mxu0 %v414
        %v442 = vpop.f32.mrf.mxu0
        %v443 = vadd.f32 %v401, %v442
        %444 = vdwg.mxu0
        %445 = vst [vmem:[%s272] sm:$0xff] %v434
        %446 = vst [vmem:[%s272 + $0x8] sm:$0xff] %v437
        %447 = vst [vmem:[%s272 + $0x10] sm:$0xff] %v440
        %448 = vst [vmem:[%s272 + $0x18] sm:$0xff] %v443
        %s449 = sand.u32 %s181, 1
        %s450 = scalar_lea.sflag [#allocation3], %s449
        %s451 = sand.u32 %s181, 1
        %s452 = smul.addr %s451, 32
        %s453 = scalar_lea.vmem [#allocation2], %s452
        // Predicated region
        $region49: #{tpu_custom_call.1} parent=47 // pred_check
          %p454 = pneg %p191
        $region50: #{tpu_custom_call.1} parent=47 // pred_check_branch
          %456 = sbr.rel (%p454) target = $region52
        $region51: #{tpu_custom_call.1} parent=47 // pred_region
          %s457 = smul.u32 4, %s21
          %459 = vsyncadd %s450, 0
          %s460 = smul.addr %s457, 8
          %s461 = scalar_lea.hbm %s7, %s460
          %s462 = sshll.u32 %s453, 4
          %s463 = int_to_ptr.vmem [resolvable:$true] %s462
          %s464 = sshll.u32 %s461, 4
          %s465 = int_to_ptr.hbm [resolvable:$true] %s464
          %470 = dma.vmem_to_hbm [thread:$0]  %s463, 512, %s465, %s450, 128, 128, 8
        $region52: #{tpu_custom_call.1} parent=47 // pred_fallthru
          _
      $region48: #{tpu_custom_call.1} parent=5 // pred_fallthru
        _
      %p471 = scmp.le.s32.totalorder 2, %s16
      // Predicated region
      $region53: #{tpu_custom_call.1} parent=5 // pred_check
        %p472 = pneg %p471
      $region54: #{tpu_custom_call.1} parent=5 // pred_check_branch
        %474 = sbr.rel (%p472) target = $region56
      $region55: #{tpu_custom_call.1} parent=5 // pred_region
        %s475 = ssub.s32 %s16, 2
        // Predicated region
        $region57: #{tpu_custom_call.1} parent=55 // pred_check
          %p476 = pneg %p197
        $region58: #{tpu_custom_call.1} parent=55 // pred_check_branch
          %478 = sbr.rel (%p476) target = $region60
        $region59: #{tpu_custom_call.1} parent=55 // pred_region
          %s479 = sand.u32 %s182, 1
          %s480 = scalar_lea.sflag [#allocation3], %s479
          %s481 = sand.u32 %s182, 1
          %s482 = smul.addr %s481, 32
          %s483 = scalar_lea.vmem [#allocation2], %s482
          %485 = dma.done %s480, 512
        $region60: #{tpu_custom_call.1} parent=55 // pred_fallthru
          _
      $region56: #{tpu_custom_call.1} parent=5 // pred_fallthru
        _
    $region6: #{tpu_custom_call.1} parent=1 // loop_footer
      %s20 = sadd.s32 1, %s16
    $region7: #{tpu_custom_call.1} parent=1 // loop_footer_branch
      %15 = sbr.rel target = $region3
    $region8: #{tpu_custom_call.1} parent=1 // loop_exit
      _
    %486 = vsyncpa [#allocation3], 1
    %s487 = scalar_lea.sflag [#allocation3], 1
    %488 = vsyncpa %s487, 1

</llo_original>
